<compile_context>
chip_gen: v5e
topology: v5e:2x2
jax: 0.10.0
libtpu: 0.0.40
codegen_flags: <defaults>
</compile_context>

<pallas_src>
import functools

import jax
import jax.numpy as jnp
from jax.experimental import pallas as pl
from jax.experimental.pallas import tpu as pltpu


def _fused_single_kernel(x_ref, s_ref, w_ref, gamma_ref, beta_ref, o_ref, *, eps):
    # x: (C_in, P), s: (1, C_in), w: (C_out, C_in), gamma/beta: (C_out, 1), o: (C_out, P)
    wg = w_ref[...] * jax.nn.sigmoid(s_ref[...])                      # fold gate into weight
    y = jnp.dot(wg, x_ref[...], preferred_element_type=jnp.float32)   # 1x1 conv == matmul (MXU)
    mean = jnp.mean(y, axis=1, keepdims=True)
    var = jnp.mean(y * y, axis=1, keepdims=True) - mean * mean        # biased batch variance
    scale = gamma_ref[...] * jax.lax.rsqrt(var + eps)
    shift = beta_ref[...] - mean * scale
    o_ref[...] = (y * scale + shift).astype(o_ref.dtype)


def _fused_tiled_kernel(x_ref, s_ref, w_ref, gamma_ref, beta_ref, o_ref,
                        wg_ref, y_ref, sum_ref, sumsq_ref,
                        *, tile_p, p, eps, needs_mask):
    # x_ref:   (C_in, tile_p)   current P tile
    # o_ref:   (C_out, p)       full output, VMEM-resident across the grid (single writeback)
    # wg_ref:  (C_out, C_in)    gated weight (computed once)
    # y_ref:   (C_out, num_tiles*tile_p) conv output held in VMEM (never hits HBM)
    # sum/sumsq_ref: (C_out, 1) per-channel accumulators
    i = pl.program_id(0)

    @pl.when(i == 0)
    def _init():
        wg_ref[...] = w_ref[...] * jax.nn.sigmoid(s_ref[...])   # hoisted out of per-tile body
        sum_ref[...] = jnp.zeros_like(sum_ref)
        sumsq_ref[...] = jnp.zeros_like(sumsq_ref)

    y = jnp.dot(wg_ref[...], x_ref[...], preferred_element_type=jnp.float32)  # (C_out, tile_p)

    if needs_mask:
        # Ragged last tile: out-of-range x columns are undefined -> keep them out of the
        # statistics.  They never reach the output (o_ref has true width p).
        col = jax.lax.broadcasted_iota(jnp.int32, y.shape, 1) + i * tile_p
        y_stats = jnp.where(col < p, y, 0.0)
    else:
        y_stats = y

    start = pl.multiple_of(i * tile_p, 128)
    y_ref[:, pl.ds(start, tile_p)] = y
    sum_ref[...] += jnp.sum(y_stats, axis=1, keepdims=True)
    sumsq_ref[...] += jnp.sum(y_stats * y_stats, axis=1, keepdims=True)

    @pl.when(i == pl.num_programs(0) - 1)
    def _finalize():
        inv_p = 1.0 / p
        mean = sum_ref[...] * inv_p
        var = sumsq_ref[...] * inv_p - mean * mean
        scale = gamma_ref[...] * jax.lax.rsqrt(var + eps)
        shift = beta_ref[...] - mean * scale
        o_ref[...] = (y_ref[:, :p] * scale + shift).astype(o_ref.dtype)


def fused_sigmoid_mul_conv_bn(x6, x10, conv_w, bn_gamma, bn_beta, *,
                              eps=1e-5, tile_p=2048, max_single_p=16384):
    """x6: (N, C_in, H, W), x10: (1, C_in, 1, 1), conv_w: (C_out, C_in, 1, 1)."""
    n, c_in, h, w = x6.shape
    c_out = conv_w.shape[0]
    p = n * h * w

    # NCHW -> (C_in, P).  For N == 1 (the module's shape) this is a pure reshape.
    if n == 1:
        x_mat = x6.reshape(c_in, p)
    else:
        x_mat = jnp.transpose(x6, (1, 0, 2, 3)).reshape(c_in, p)
    s_mat = x10.reshape(1, c_in)
    w_mat = conv_w.reshape(c_out, c_in)
    gamma = bn_gamma.reshape(c_out, 1)
    beta = bn_beta.reshape(c_out, 1)

    small_specs = [
        pl.BlockSpec((1, c_in), lambda i: (0, 0)),       # SE logits (resident)
        pl.BlockSpec((c_out, c_in), lambda i: (0, 0)),   # conv weight (resident)
        pl.BlockSpec((c_out, 1), lambda i: (0, 0)),      # gamma
        pl.BlockSpec((c_out, 1), lambda i: (0, 0)),      # beta
    ]
    out_spec = pl.BlockSpec((c_out, p), lambda i: (0, 0))   # full output resident, 1 writeback
    out_shape = jax.ShapeDtypeStruct((c_out, p), x6.dtype)
    # NOTE(v7x): the single 'arbitrary' grid axis runs on one TensorCore; negligible at these
    # sizes (launch/DMA-latency bound), revisit with a 2-way parallel split only for huge P.
    cparams = pltpu.CompilerParams(dimension_semantics=("arbitrary",),
                                   vmem_limit_bytes=32 * 1024 * 1024)

    if p <= max_single_p:
        # Whole problem fits in VMEM: one grid step, no scratch, no cold-path branches.
        out_mat = pl.pallas_call(
            functools.partial(_fused_single_kernel, eps=eps),
            out_shape=out_shape,
            grid=(1,),
            in_specs=[pl.BlockSpec((c_in, p), lambda i: (0, 0))] + small_specs,
            out_specs=out_spec,
            compiler_params=cparams,
        )(x_mat, s_mat, w_mat, gamma, beta)
    else:
        num_tiles = pl.cdiv(p, tile_p)
        needs_mask = (p % tile_p) != 0
        out_mat = pl.pallas_call(
            functools.partial(_fused_tiled_kernel, tile_p=tile_p, p=p, eps=eps,
                              needs_mask=needs_mask),
            out_shape=out_shape,
            grid=(num_tiles,),
            in_specs=[pl.BlockSpec((c_in, tile_p), lambda i: (0, i))] + small_specs,
            out_specs=out_spec,
            scratch_shapes=[
                pltpu.VMEM((c_out, c_in), jnp.float32),                 # gated weight
                pltpu.VMEM((c_out, num_tiles * tile_p), jnp.float32),   # conv output (in VMEM)
                pltpu.VMEM((c_out, 1), jnp.float32),                    # sum
                pltpu.VMEM((c_out, 1), jnp.float32),                    # sum of squares
            ],
            compiler_params=cparams,
        )(x_mat, s_mat, w_mat, gamma, beta)

    # (C_out, P) -> NCHW (pure reshape for N == 1).
    if n == 1:
        return out_mat.reshape(1, c_out, h, w)
    return jnp.transpose(out_mat.reshape(c_out, n, h, w), (1, 0, 2, 3))


def reference(x6, x10, conv_w, bn_gamma, bn_beta, eps=1e-5):
    """Plain-JAX reference (sigmoid gate -> 1x1 conv -> training-mode BatchNorm2d)."""
    gate = jax.nn.sigmoid(x10)
    xg = x6 * gate
    y = jax.lax.conv_general_dilated(
        xg, conv_w, window_strides=(1, 1), padding="VALID",
        dimension_numbers=("NCHW", "OIHW", "NCHW"))
    mean = jnp.mean(y, axis=(0, 2, 3), keepdims=True)
    var = jnp.mean((y - mean) ** 2, axis=(0, 2, 3), keepdims=True)
    y_hat = (y - mean) * jax.lax.rsqrt(var + eps)
    return y_hat * bn_gamma.reshape(1, -1, 1, 1) + bn_beta.reshape(1, -1, 1, 1)


if __name__ == "__main__":
    key = jax.random.PRNGKey(0)
    k1, k2, k3 = jax.random.split(key, 3)

    # Channels fixed by the module (Conv2d(48, 24, 1, bias=False)); small spatial for the test.
    N, C_IN, C_OUT, H, W = 1, 48, 24, 28, 28    # P = 784

    x6 = jax.random.normal(k1, (N, C_IN, H, W), dtype=jnp.float32)
    x10 = jax.random.normal(k2, (1, C_IN, 1, 1), dtype=jnp.float32)
    conv_w = jax.random.normal(k3, (C_OUT, C_IN, 1, 1), dtype=jnp.float32) * 0.05
    bn_gamma = jnp.ones((C_OUT,), dtype=jnp.float32) * 1.3
    bn_beta = jnp.ones((C_OUT,), dtype=jnp.float32) * 0.1

    ref = jax.block_until_ready(reference(x6, x10, conv_w, bn_gamma, bn_beta))

    # Fast path (matches the module's real shape class): single grid step, everything in VMEM.
    out_single = jax.block_until_ready(
        fused_sigmoid_mul_conv_bn(x6, x10, conv_w, bn_gamma, bn_beta))
    assert out_single.shape == (N, C_OUT, H, W)
    assert jnp.allclose(out_single, ref, atol=1e-4, rtol=1e-4)

    # Tiled path (forced): exercises ragged-last-tile masking + VMEM-resident y/output.
    out_tiled = jax.block_until_ready(
        fused_sigmoid_mul_conv_bn(x6, x10, conv_w, bn_gamma, bn_beta,
                                  tile_p=256, max_single_p=0))
    assert out_tiled.shape == (N, C_OUT, H, W)
    assert jnp.allclose(out_tiled, ref, atol=1e-4, rtol=1e-4)

    print("KERNEL_OK")
</pallas_src>

<mosaic_0001>
module attributes {stable_mosaic.version = 11 : i64} {
  func.func @_fused_single_kernel(%arg0: i32, %arg1: memref<48x784xf32, #tpu.memory_space<vmem>>, %arg2: memref<1x48xf32, #tpu.memory_space<vmem>>, %arg3: memref<24x48xf32, #tpu.memory_space<vmem>>, %arg4: memref<24x1xf32, #tpu.memory_space<vmem>>, %arg5: memref<24x1xf32, #tpu.memory_space<vmem>>, %arg6: memref<24x784xf32, #tpu.memory_space<vmem>>) attributes {dimension_semantics = [#tpu.dimension_semantics<arbitrary>], iteration_bounds = array<i64: 1>, scalar_prefetch = 0 : i64, scratch_operands = 0 : i64, tpu.core_type = #tpu.core_type<tc>, window_params = [{pipeline_mode = #tpu.pipeline_mode<synchronous>, transform_indices = @transform_0, window_bounds = array<i64: 48, 784>}, {pipeline_mode = #tpu.pipeline_mode<synchronous>, transform_indices = @transform_1, window_bounds = array<i64: 1, 48>}, {pipeline_mode = #tpu.pipeline_mode<synchronous>, transform_indices = @transform_2, window_bounds = array<i64: 24, 48>}, {pipeline_mode = #tpu.pipeline_mode<synchronous>, transform_indices = @transform_3, window_bounds = array<i64: 24, 1>}, {pipeline_mode = #tpu.pipeline_mode<synchronous>, transform_indices = @transform_4, window_bounds = array<i64: 24, 1>}, {pipeline_mode = #tpu.pipeline_mode<synchronous>, transform_indices = @transform_5, window_bounds = array<i64: 24, 784>}]} {
    %c0 = arith.constant 0 : index
    %c0_0 = arith.constant 0 : index
    %0 = vector.load %arg3[%c0, %c0_0] : memref<24x48xf32, #tpu.memory_space<vmem>>, vector<24x48xf32>
    %c0_1 = arith.constant 0 : index
    %c0_2 = arith.constant 0 : index
    %1 = vector.load %arg2[%c0_1, %c0_2] : memref<1x48xf32, #tpu.memory_space<vmem>>, vector<1x48xf32>
    %2 = arith.negf %1 : vector<1x48xf32>
    %3 = math.exp %2 : vector<1x48xf32>
    %cst = arith.constant 1.000000e+00 : f32
    %4 = vector.broadcast %cst : f32 to vector<1x48xf32>
    %5 = arith.addf %4, %3 : vector<1x48xf32>
    %6 = arith.divf %4, %5 : vector<1x48xf32>
    %7 = vector.broadcast %6 : vector<1x48xf32> to vector<24x48xf32>
    %8 = arith.mulf %0, %7 : vector<24x48xf32>
    %c0_3 = arith.constant 0 : index
    %c0_4 = arith.constant 0 : index
    %9 = vector.load %arg1[%c0_3, %c0_4] : memref<48x784xf32, #tpu.memory_space<vmem>>, vector<48x784xf32>
    %cst_5 = arith.constant dense<0.000000e+00> : vector<24x784xf32>
    %10 = tpu.matmul %8, %9, %cst_5 {dimension_numbers = #tpu.dot_dimension_numbers<[1], [0], [0], [1], [0, 0, 1, 1], [], []>} : vector<24x48xf32>, vector<48x784xf32>, vector<24x784xf32> -> vector<24x784xf32>
    %cst_6 = arith.constant dense<0.000000e+00> : vector<24xf32>
    %11 = vector.multi_reduction <add>, %10, %cst_6 [1] : vector<24x784xf32> to vector<24xf32>
    %12 = vector.shape_cast %11 : vector<24xf32> to vector<24x1xf32>
    %cst_7 = arith.constant 7.840000e+02 : f32
    %13 = vector.broadcast %cst_7 : f32 to vector<24x1xf32>
    %14 = arith.divf %12, %13 : vector<24x1xf32>
    %15 = arith.mulf %10, %10 : vector<24x784xf32>
    %cst_8 = arith.constant dense<0.000000e+00> : vector<24xf32>
    %16 = vector.multi_reduction <add>, %15, %cst_8 [1] : vector<24x784xf32> to vector<24xf32>
    %17 = vector.shape_cast %16 : vector<24xf32> to vector<24x1xf32>
    %cst_9 = arith.constant 7.840000e+02 : f32
    %18 = vector.broadcast %cst_9 : f32 to vector<24x1xf32>
    %19 = arith.divf %17, %18 : vector<24x1xf32>
    %20 = arith.mulf %14, %14 : vector<24x1xf32>
    %21 = arith.subf %19, %20 : vector<24x1xf32>
    %c0_10 = arith.constant 0 : index
    %c0_11 = arith.constant 0 : index
    %22 = vector.load %arg4[%c0_10, %c0_11] : memref<24x1xf32, #tpu.memory_space<vmem>>, vector<24x1xf32>
    %cst_12 = arith.constant 9.99999974E-6 : f32
    %23 = vector.broadcast %cst_12 : f32 to vector<24x1xf32>
    %24 = arith.addf %21, %23 : vector<24x1xf32>
    %25 = math.rsqrt %24 : vector<24x1xf32>
    %26 = arith.mulf %22, %25 : vector<24x1xf32>
    %c0_13 = arith.constant 0 : index
    %c0_14 = arith.constant 0 : index
    %27 = vector.load %arg5[%c0_13, %c0_14] : memref<24x1xf32, #tpu.memory_space<vmem>>, vector<24x1xf32>
    %28 = arith.mulf %14, %26 : vector<24x1xf32>
    %29 = arith.subf %27, %28 : vector<24x1xf32>
    %30 = vector.broadcast %26 : vector<24x1xf32> to vector<24x784xf32>
    %31 = arith.mulf %10, %30 : vector<24x784xf32>
    %32 = vector.broadcast %29 : vector<24x1xf32> to vector<24x784xf32>
    %33 = arith.addf %31, %32 : vector<24x784xf32>
    %c0_15 = arith.constant 0 : index
    %c0_16 = arith.constant 0 : index
    %34 = vector.load %arg6[%c0_15, %c0_16] : memref<24x784xf32, #tpu.memory_space<vmem>>, vector<24x784xf32>
    tpu.vector_store %arg6[%c0_15, %c0_16], %33 {strides = array<i32>} : memref<24x784xf32, #tpu.memory_space<vmem>>, vector<24x784xf32>,
    return
  }
  func.func @transform_0(%arg0: i32) -> (i32, i32) {
    %c0_i32 = arith.constant 0 : i32
    %c0_i32_0 = arith.constant 0 : i32
    %c0_i32_1 = arith.constant 0 : i32
    return %c0_i32, %c0_i32_0 : i32, i32
  }
  func.func @transform_1(%arg0: i32) -> (i32, i32) {
    %c0_i32 = arith.constant 0 : i32
    %c0_i32_0 = arith.constant 0 : i32
    %c0_i32_1 = arith.constant 0 : i32
    return %c0_i32, %c0_i32_0 : i32, i32
  }
  func.func @transform_2(%arg0: i32) -> (i32, i32) {
    %c0_i32 = arith.constant 0 : i32
    %c0_i32_0 = arith.constant 0 : i32
    %c0_i32_1 = arith.constant 0 : i32
    return %c0_i32, %c0_i32_0 : i32, i32
  }
  func.func @transform_3(%arg0: i32) -> (i32, i32) {
    %c0_i32 = arith.constant 0 : i32
    %c0_i32_0 = arith.constant 0 : i32
    %c0_i32_1 = arith.constant 0 : i32
    return %c0_i32, %c0_i32_0 : i32, i32
  }
  func.func @transform_4(%arg0: i32) -> (i32, i32) {
    %c0_i32 = arith.constant 0 : i32
    %c0_i32_0 = arith.constant 0 : i32
    %c0_i32_1 = arith.constant 0 : i32
    return %c0_i32, %c0_i32_0 : i32, i32
  }
  func.func @transform_5(%arg0: i32) -> (i32, i32) {
    %c0_i32 = arith.constant 0 : i32
    %c0_i32_0 = arith.constant 0 : i32
    %c0_i32_1 = arith.constant 0 : i32
    return %c0_i32, %c0_i32_0 : i32, i32
  }
}

</mosaic_0001>

<llo_original>
// kernel: tpu_custom_call.1
$region0: #{tpu_custom_call.1}
  #allocation0 [shape = 'u32[]', space=smem, size = 0x4, offset = 0x4, fixed_abs, tag = 'smem constant byte address 0x4 - core index']
  #allocation1 [shape = 'u32[72,128]{1,0:T(1,128)}', space=vmem, size = 0x9000, scoped, tag = 'internal scratch']
  %s0 = inlined_call_operand.hbm [shape: f32[48,784], index: 0, kind: input, shape index: {}]
  %s1 = inlined_call_operand.vmem [shape: f32[1,48], index: 1, kind: input, shape index: {}]
  %s2 = inlined_call_operand.vmem [shape: f32[24,48], index: 2, kind: input, shape index: {}]
  %s3 = inlined_call_operand.vmem [shape: f32[24,1], index: 3, kind: input, shape index: {}]
  %s4 = inlined_call_operand.vmem [shape: f32[24,1], index: 4, kind: input, shape index: {}]
  %s5 = inlined_call_operand.hbm [shape: f32[24,784], index: 5, kind: output, shape index: {}]
  %s6 = sld [smem:[#allocation0]]
  $region34: #{tpu_custom_call.1} parent=0
    _
  %s8 = ssub.s32 1, %s6
  %s9 = scalar_select 0, %s8, %s6
  $region1: #{tpu_custom_call.1} parent=0
    #allocation2 [shape = 'u8[172032]{0}', space=vmem, size = 0x2a000, scoped, tag = 'input window, operand 0, single buffered']
    #allocation3 [shape = 's32[1]{0}', space=sflag, size = 0x4, scoped, tag = 'scoped memory for tpu_custom_call.1']
    #allocation4 [shape = 's32[1]{0}', space=sflag, size = 0x4, scoped, tag = 'scoped memory for tpu_custom_call.1']
    #allocation5 [shape = 'u8[86016]{0}', space=vmem, size = 0x15000, scoped, tag = 'output window, operand 0, single buffered']
    %10 = vsyncpa [#allocation3], 0
    %11 = vsyncpa [#allocation4], 0
    // Predicated region
    $region2: #{tpu_custom_call.1} parent=1 // pred_check
      _
    $region3: #{tpu_custom_call.1} parent=1 // pred_check_branch
      %13 = sbr.rel (0) target = $region5
    $region4: #{tpu_custom_call.1} parent=1 // pred_region
      %15 = vsyncadd [#allocation3], 0
      %s16 = sshll.u32 %s0, 4
      %s17 = int_to_ptr.hbm [resolvable:$true] %s16
      %s18 = sshll.u32 [#allocation2], 4
      %s19 = int_to_ptr.vmem [resolvable:$true] %s18
      %24 = dma.hbm_to_vmem [thread:$0]  %s17, 5376, %s19, [#allocation3], 896, 896, 56
    $region5: #{tpu_custom_call.1} parent=1 // pred_fallthru
      _
    // Predicated region
    $region6: #{tpu_custom_call.1} parent=1 // pred_check
      _
    $region7: #{tpu_custom_call.1} parent=1 // pred_check_branch
      %26 = sbr.rel (0) target = $region9
    $region8: #{tpu_custom_call.1} parent=1 // pred_region
      _
    $region9: #{tpu_custom_call.1} parent=1 // pred_fallthru
      _
    // Predicated region
    $region10: #{tpu_custom_call.1} parent=1 // pred_check
      _
    $region11: #{tpu_custom_call.1} parent=1 // pred_check_branch
      %28 = sbr.rel (0) target = $region13
    $region12: #{tpu_custom_call.1} parent=1 // pred_region
      _
    $region13: #{tpu_custom_call.1} parent=1 // pred_fallthru
      _
    // Predicated region
    $region14: #{tpu_custom_call.1} parent=1 // pred_check
      _
    $region15: #{tpu_custom_call.1} parent=1 // pred_check_branch
      %30 = sbr.rel (0) target = $region17
    $region16: #{tpu_custom_call.1} parent=1 // pred_region
      _
    $region17: #{tpu_custom_call.1} parent=1 // pred_fallthru
      _
    // Predicated region
    $region18: #{tpu_custom_call.1} parent=1 // pred_check
      _
    $region19: #{tpu_custom_call.1} parent=1 // pred_check_branch
      %32 = sbr.rel (0) target = $region21
    $region20: #{tpu_custom_call.1} parent=1 // pred_region
      _
    $region21: #{tpu_custom_call.1} parent=1 // pred_fallthru
      _
    // Predicated region
    $region22: #{tpu_custom_call.1} parent=1 // pred_check
      _
    $region23: #{tpu_custom_call.1} parent=1 // pred_check_branch
      %34 = sbr.rel (0) target = $region25
    $region24: #{tpu_custom_call.1} parent=1 // pred_region
      %36 = dma.done [#allocation3], 5376
    $region25: #{tpu_custom_call.1} parent=1 // pred_fallthru
      _
    %v37 = vld [vmem:[%s2] sm:$0xff]
    %v38 = vld [vmem:[%s2 + $0x8] sm:$0xff]
    %v39 = vld [vmem:[%s2 + $0x10] sm:$0xff]
    %v40 = vld [vmem:[%s1] sm:$0x1]
    %v41 = vxor.u32 %v40, 2147483648
    %v42 = vmul.f32 %v41, 1.442695
    %v43 = vpow.pop %v42
    %v44 = vadd.f32 %v43, 1.0
    %v45 = vrcp.pop %v44
    %v46 = vmul.f32 %v44, %v45
    %v47 = vsub.f32 1.0, %v46
    %v48 = vmul.f32 %v45, %v47
    %v49 = vadd.f32 %v45, %v48
    %vm50 = vweird.f32 %v44
    %vm51 = vweird.f32 %v45
    %vm52 = vmor %vm50, %vm51
    %v53 = vsel %vm52, %v45, %v49
    %v54 = vand.u32 2147483647, %v44
    %vm55 = vcmp.eq.f32.partialorder %v54, 8.507059e+37
    %v56 = vand.u32 %v44, 2147483648
    %v57 = vor.u32 1.1754944e-38, %v56
    %v58 = vsel %vm55, %v57, %v53
    %v59 = vmul.f32 1.0, %v58
    %v61 = vperm.slane %v59, 0
    %v63 = vmul.f32 %v37, %v61
    %v64 = vmul.f32 %v38, %v61
    %v65 = vmul.f32 %v39, %v61
    %v66 = vld [vmem:[#allocation2] sm:$0xff]
    %v67 = vld [vmem:[#allocation2 + $0x8] sm:$0xff]
    %v68 = vld [vmem:[#allocation2 + $0x10] sm:$0xff]
    %v69 = vld [vmem:[#allocation2 + $0x18] sm:$0xff]
    %v70 = vld [vmem:[#allocation2 + $0x20] sm:$0xff]
    %v71 = vld [vmem:[#allocation2 + $0x28] sm:$0xff]
    %v72 = vld [vmem:[#allocation2 + $0x30] sm:$0xff]
    %v73 = vld [vmem:[#allocation2 + $0x38] sm:$0xff]
    %v74 = vld [vmem:[#allocation2 + $0x40] sm:$0xff]
    %v75 = vld [vmem:[#allocation2 + $0x48] sm:$0xff]
    %v76 = vld [vmem:[#allocation2 + $0x50] sm:$0xff]
    %v77 = vld [vmem:[#allocation2 + $0x58] sm:$0xff]
    %v78 = vld [vmem:[#allocation2 + $0x60] sm:$0xff]
    %v79 = vld [vmem:[#allocation2 + $0x68] sm:$0xff]
    %v80 = vld [vmem:[#allocation2 + $0x70] sm:$0xff]
    %v81 = vld [vmem:[#allocation2 + $0x78] sm:$0xff]
    %v82 = vld [vmem:[#allocation2 + $0x80] sm:$0xff]
    %v83 = vld [vmem:[#allocation2 + $0x88] sm:$0xff]
    %v84 = vld [vmem:[#allocation2 + $0x90] sm:$0xff]
    %v85 = vld [vmem:[#allocation2 + $0x98] sm:$0xff]
    %v86 = vld [vmem:[#allocation2 + $0xa0] sm:$0xff]
    %v87 = vld [vmem:[#allocation2 + $0xa8] sm:$0xff]
    %v88 = vld [vmem:[#allocation2 + $0xb0] sm:$0xff]
    %v89 = vld [vmem:[#allocation2 + $0xb8] sm:$0xff]
    %v90 = vld [vmem:[#allocation2 + $0xc0] sm:$0xff]
    %v91 = vld [vmem:[#allocation2 + $0xc8] sm:$0xff]
    %v92 = vld [vmem:[#allocation2 + $0xd0] sm:$0xff]
    %v93 = vld [vmem:[#allocation2 + $0xd8] sm:$0xff]
    %v94 = vld [vmem:[#allocation2 + $0xe0] sm:$0xff]
    %v95 = vld [vmem:[#allocation2 + $0xe8] sm:$0xff]
    %v96 = vld [vmem:[#allocation2 + $0xf0] sm:$0xff]
    %v97 = vld [vmem:[#allocation2 + $0xf8] sm:$0xff]
    %v98 = vld [vmem:[#allocation2 + $0x100] sm:$0xff]
    %v99 = vld [vmem:[#allocation2 + $0x108] sm:$0xff]
    %v100 = vld [vmem:[#allocation2 + $0x110] sm:$0xff]
    %v101 = vld [vmem:[#allocation2 + $0x118] sm:$0xff]
    %v102 = vld [vmem:[#allocation2 + $0x120] sm:$0xff]
    %v103 = vld [vmem:[#allocation2 + $0x128] sm:$0xff]
    %v104 = vld [vmem:[#allocation2 + $0x130] sm:$0xff]
    %v105 = vld [vmem:[#allocation2 + $0x138] sm:$0xff]
    %v106 = vld [vmem:[#allocation2 + $0x140] sm:$0xff]
    %v107 = vld [vmem:[#allocation2 + $0x148] sm:$0xff]
    %vm108 = vcmask 392192
    %v110 = vsel %vm108, %v63, 0
    %v113 = vsel %vm108, %v64, 0
    %v116 = vsel %vm108, %v65, 0
    %118 = vmatpush.msra.mxu0 0.0
    %119 = vmatpush.msra.mxu0 0.0
    %120 = vmatpush.msra.mxu0 0.0
    %121 = vmatpush.msra.mxu0 0.0
    %122 = vmatpush.msra.mxu0 0.0
    %123 = vmatpush.msra.mxu0 0.0
    %124 = vmatpush.msra.mxu0 0.0
    %125 = vmatpush.msra.mxu0 0.0
    %126 = vmatpush.msra.mxu0 0.0
    %127 = vmatpush.msra.mxu0 0.0
    %128 = vmatpush.msra.mxu0 %v101
    %129 = vmatpush.msra.mxu0 %v94
    %130 = vmatpush.msra.mxu0 %v87
    %131 = vmatpush.msra.mxu0 %v80
    %132 = vmatpush.msra.mxu0 %v73
    %133 = vmatpush.msra.mxu0 %v66
    %134 = vmatmul.f32.gmra.mxu0 %v110
    %v135 = vpop.f32.mrf.mxu0
    %v136 = vadd.f32 0.0, %v135
    %137 = vmatmul.f32.gmra.mxu0 %v113
    %v138 = vpop.f32.mrf.mxu0
    %v139 = vadd.f32 0.0, %v138
    %140 = vmatmul.f32.gmra.mxu0 %v116
    %v141 = vpop.f32.mrf.mxu0
    %v142 = vadd.f32 0.0, %v141
    %143 = vdwg.mxu0
    %144 = vmatpush.msra.mxu0 0.0
    %145 = vmatpush.msra.mxu0 0.0
    %146 = vmatpush.msra.mxu0 0.0
    %147 = vmatpush.msra.mxu0 0.0
    %148 = vmatpush.msra.mxu0 0.0
    %149 = vmatpush.msra.mxu0 0.0
    %150 = vmatpush.msra.mxu0 0.0
    %151 = vmatpush.msra.mxu0 0.0
    %152 = vmatpush.msra.mxu0 0.0
    %153 = vmatpush.msra.mxu0 0.0
    %154 = vmatpush.msra.mxu0 %v102
    %155 = vmatpush.msra.mxu0 %v95
    %156 = vmatpush.msra.mxu0 %v88
    %157 = vmatpush.msra.mxu0 %v81
    %158 = vmatpush.msra.mxu0 %v74
    %159 = vmatpush.msra.mxu0 %v67
    %160 = vmatmul.f32.gmra.mxu0 %v110
    %v161 = vpop.f32.mrf.mxu0
    %v162 = vadd.f32 0.0, %v161
    %163 = vmatmul.f32.gmra.mxu0 %v113
    %v164 = vpop.f32.mrf.mxu0
    %v165 = vadd.f32 0.0, %v164
    %166 = vmatmul.f32.gmra.mxu0 %v116
    %v167 = vpop.f32.mrf.mxu0
    %v168 = vadd.f32 0.0, %v167
    %169 = vdwg.mxu0
    %170 = vmatpush.msra.mxu0 0.0
    %171 = vmatpush.msra.mxu0 0.0
    %172 = vmatpush.msra.mxu0 0.0
    %173 = vmatpush.msra.mxu0 0.0
    %174 = vmatpush.msra.mxu0 0.0
    %175 = vmatpush.msra.mxu0 0.0
    %176 = vmatpush.msra.mxu0 0.0
    %177 = vmatpush.msra.mxu0 0.0
    %178 = vmatpush.msra.mxu0 0.0
    %179 = vmatpush.msra.mxu0 0.0
    %180 = vmatpush.msra.mxu0 %v103
    %181 = vmatpush.msra.mxu0 %v96
    %182 = vmatpush.msra.mxu0 %v89
    %183 = vmatpush.msra.mxu0 %v82
    %184 = vmatpush.msra.mxu0 %v75
    %185 = vmatpush.msra.mxu0 %v68
    %186 = vmatmul.f32.gmra.mxu0 %v110
    %v187 = vpop.f32.mrf.mxu0
    %v188 = vadd.f32 0.0, %v187
    %189 = vmatmul.f32.gmra.mxu0 %v113
    %v190 = vpop.f32.mrf.mxu0
    %v191 = vadd.f32 0.0, %v190
    %192 = vmatmul.f32.gmra.mxu0 %v116
    %v193 = vpop.f32.mrf.mxu0
    %v194 = vadd.f32 0.0, %v193
    %195 = vdwg.mxu0
    %196 = vmatpush.msra.mxu0 0.0
    %197 = vmatpush.msra.mxu0 0.0
    %198 = vmatpush.msra.mxu0 0.0
    %199 = vmatpush.msra.mxu0 0.0
    %200 = vmatpush.msra.mxu0 0.0
    %201 = vmatpush.msra.mxu0 0.0
    %202 = vmatpush.msra.mxu0 0.0
    %203 = vmatpush.msra.mxu0 0.0
    %204 = vmatpush.msra.mxu0 0.0
    %205 = vmatpush.msra.mxu0 0.0
    %206 = vmatpush.msra.mxu0 %v104
    %207 = vmatpush.msra.mxu0 %v97
    %208 = vmatpush.msra.mxu0 %v90
    %209 = vmatpush.msra.mxu0 %v83
    %210 = vmatpush.msra.mxu0 %v76
    %211 = vmatpush.msra.mxu0 %v69
    %212 = vmatmul.f32.gmra.mxu0 %v110
    %v213 = vpop.f32.mrf.mxu0
    %v214 = vadd.f32 0.0, %v213
    %215 = vmatmul.f32.gmra.mxu0 %v113
    %v216 = vpop.f32.mrf.mxu0
    %v217 = vadd.f32 0.0, %v216
    %218 = vmatmul.f32.gmra.mxu0 %v116
    %v219 = vpop.f32.mrf.mxu0
    %v220 = vadd.f32 0.0, %v219
    %221 = vdwg.mxu0
    %222 = vmatpush.msra.mxu0 0.0
    %223 = vmatpush.msra.mxu0 0.0
    %224 = vmatpush.msra.mxu0 0.0
    %225 = vmatpush.msra.mxu0 0.0
    %226 = vmatpush.msra.mxu0 0.0
    %227 = vmatpush.msra.mxu0 0.0
    %228 = vmatpush.msra.mxu0 0.0
    %229 = vmatpush.msra.mxu0 0.0
    %230 = vmatpush.msra.mxu0 0.0
    %231 = vmatpush.msra.mxu0 0.0
    %232 = vmatpush.msra.mxu0 %v105
    %233 = vmatpush.msra.mxu0 %v98
    %234 = vmatpush.msra.mxu0 %v91
    %235 = vmatpush.msra.mxu0 %v84
    %236 = vmatpush.msra.mxu0 %v77
    %237 = vmatpush.msra.mxu0 %v70
    %238 = vmatmul.f32.gmra.mxu0 %v110
    %v239 = vpop.f32.mrf.mxu0
    %v240 = vadd.f32 0.0, %v239
    %241 = vmatmul.f32.gmra.mxu0 %v113
    %v242 = vpop.f32.mrf.mxu0
    %v243 = vadd.f32 0.0, %v242
    %244 = vmatmul.f32.gmra.mxu0 %v116
    %v245 = vpop.f32.mrf.mxu0
    %v246 = vadd.f32 0.0, %v245
    %247 = vdwg.mxu0
    %248 = vmatpush.msra.mxu0 0.0
    %249 = vmatpush.msra.mxu0 0.0
    %250 = vmatpush.msra.mxu0 0.0
    %251 = vmatpush.msra.mxu0 0.0
    %252 = vmatpush.msra.mxu0 0.0
    %253 = vmatpush.msra.mxu0 0.0
    %254 = vmatpush.msra.mxu0 0.0
    %255 = vmatpush.msra.mxu0 0.0
    %256 = vmatpush.msra.mxu0 0.0
    %257 = vmatpush.msra.mxu0 0.0
    %258 = vmatpush.msra.mxu0 %v106
    %259 = vmatpush.msra.mxu0 %v99
    %260 = vmatpush.msra.mxu0 %v92
    %261 = vmatpush.msra.mxu0 %v85
    %262 = vmatpush.msra.mxu0 %v78
    %263 = vmatpush.msra.mxu0 %v71
    %264 = vmatmul.f32.gmra.mxu0 %v110
    %v265 = vpop.f32.mrf.mxu0
    %v266 = vadd.f32 0.0, %v265
    %267 = vmatmul.f32.gmra.mxu0 %v113
    %v268 = vpop.f32.mrf.mxu0
    %v269 = vadd.f32 0.0, %v268
    %270 = vmatmul.f32.gmra.mxu0 %v116
    %v271 = vpop.f32.mrf.mxu0
    %v272 = vadd.f32 0.0, %v271
    %273 = vdwg.mxu0
    %274 = vmatpush.msra.mxu0 0.0
    %275 = vmatpush.msra.mxu0 0.0
    %276 = vmatpush.msra.mxu0 0.0
    %277 = vmatpush.msra.mxu0 0.0
    %278 = vmatpush.msra.mxu0 0.0
    %279 = vmatpush.msra.mxu0 0.0
    %280 = vmatpush.msra.mxu0 0.0
    %281 = vmatpush.msra.mxu0 0.0
    %282 = vmatpush.msra.mxu0 0.0
    %283 = vmatpush.msra.mxu0 0.0
    %284 = vmatpush.msra.mxu0 %v107
    %285 = vmatpush.msra.mxu0 %v100
    %286 = vmatpush.msra.mxu0 %v93
    %287 = vmatpush.msra.mxu0 %v86
    %288 = vmatpush.msra.mxu0 %v79
    %289 = vmatpush.msra.mxu0 %v72
    %290 = vmatmul.f32.gmra.mxu0 %v110
    %v291 = vpop.f32.mrf.mxu0
    %v292 = vadd.f32 0.0, %v291
    %293 = vmatmul.f32.gmra.mxu0 %v113
    %v294 = vpop.f32.mrf.mxu0
    %v295 = vadd.f32 0.0, %v294
    %296 = vmatmul.f32.gmra.mxu0 %v116
    %v297 = vpop.f32.mrf.mxu0
    %v298 = vadd.f32 0.0, %v297
    %299 = vdwg.mxu0
    %v300 = vadd.f32 %v136, %v162
    %v301 = vadd.f32 %v300, %v188
    %v302 = vadd.f32 %v301, %v214
    %v303 = vadd.f32 %v302, %v240
    %v304 = vadd.f32 %v303, %v266
    %vm305 = vcmask 130048
    %v306 = vsel %vm305, %v292, 0.0
    %v307 = vadd.f32 %v304, %v306
    %308 = vadd.xlane.f32.xlu0 %v307
    %v309 = vpop.xlane.xlu0 %308
    %v310 = vadd.f32 %v139, %v165
    %v311 = vadd.f32 %v310, %v191
    %v312 = vadd.f32 %v311, %v217
    %v313 = vadd.f32 %v312, %v243
    %v314 = vadd.f32 %v313, %v269
    %v315 = vsel %vm305, %v295, 0.0
    %v316 = vadd.f32 %v314, %v315
    %317 = vadd.xlane.f32.xlu0 %v316
    %v318 = vpop.xlane.xlu0 %317
    %v319 = vadd.f32 %v142, %v168
    %v320 = vadd.f32 %v319, %v194
    %v321 = vadd.f32 %v320, %v220
    %v322 = vadd.f32 %v321, %v246
    %v323 = vadd.f32 %v322, %v272
    %v324 = vsel %vm305, %v298, 0.0
    %v325 = vadd.f32 %v323, %v324
    %326 = vadd.xlane.f32.xlu0 %v325
    %v327 = vpop.xlane.xlu0 %326
    %v328 = vrcp.pop 784.0
    %v329 = vmul.f32 784.0, %v328
    %v330 = vsub.f32 1.0, %v329
    %v331 = vmul.f32 %v328, %v330
    %v332 = vadd.f32 %v328, %v331
    %vm333 = vweird.f32 %v328
    %v334 = vsel %vm333, %v328, %v332
    %v335 = vmul.f32 %v309, %v334
    %v336 = vmul.f32 %v318, %v334
    %v337 = vmul.f32 %v327, %v334
    %v338 = vmul.f32 %v136, %v136
    %v339 = vmul.f32 %v162, %v162
    %v340 = vmul.f32 %v188, %v188
    %v341 = vmul.f32 %v214, %v214
    %v342 = vmul.f32 %v240, %v240
    %v343 = vmul.f32 %v266, %v266
    %v344 = vmul.f32 %v292, %v292
    %v345 = vmul.f32 %v139, %v139
    %v346 = vmul.f32 %v165, %v165
    %v347 = vmul.f32 %v191, %v191
    %v348 = vmul.f32 %v217, %v217
    %v349 = vmul.f32 %v243, %v243
    %v350 = vmul.f32 %v269, %v269
    %v351 = vmul.f32 %v295, %v295
    %v352 = vmul.f32 %v142, %v142
    %v353 = vmul.f32 %v168, %v168
    %v354 = vmul.f32 %v194, %v194
    %v355 = vmul.f32 %v220, %v220
    %v356 = vmul.f32 %v246, %v246
    %v357 = vmul.f32 %v272, %v272
    %v358 = vmul.f32 %v298, %v298
    %v359 = vadd.f32 %v338, %v339
    %v360 = vadd.f32 %v359, %v340
    %v361 = vadd.f32 %v360, %v341
    %v362 = vadd.f32 %v361, %v342
    %v363 = vadd.f32 %v362, %v343
    %v364 = vsel %vm305, %v344, 0.0
    %v365 = vadd.f32 %v363, %v364
    %366 = vadd.xlane.f32.xlu0 %v365
    %v367 = vpop.xlane.xlu0 %366
    %v368 = vadd.f32 %v345, %v346
    %v369 = vadd.f32 %v368, %v347
    %v370 = vadd.f32 %v369, %v348
    %v371 = vadd.f32 %v370, %v349
    %v372 = vadd.f32 %v371, %v350
    %v373 = vsel %vm305, %v351, 0.0
    %v374 = vadd.f32 %v372, %v373
    %375 = vadd.xlane.f32.xlu0 %v374
    %v376 = vpop.xlane.xlu0 %375
    %v377 = vadd.f32 %v352, %v353
    %v378 = vadd.f32 %v377, %v354
    %v379 = vadd.f32 %v378, %v355
    %v380 = vadd.f32 %v379, %v356
    %v381 = vadd.f32 %v380, %v357
    %v382 = vsel %vm305, %v358, 0.0
    %v383 = vadd.f32 %v381, %v382
    %384 = vadd.xlane.f32.xlu0 %v383
    %v385 = vpop.xlane.xlu0 %384
    %v386 = vmul.f32 %v367, %v334
    %v387 = vmul.f32 %v376, %v334
    %v388 = vmul.f32 %v385, %v334
    %v389 = vmul.f32 %v335, %v335
    %v390 = vmul.f32 %v336, %v336
    %v391 = vmul.f32 %v337, %v337
    %v392 = vsub.f32 %v386, %v389
    %v393 = vsub.f32 %v387, %v390
    %v394 = vsub.f32 %v388, %v391
    %v395 = vld [vmem:[%s3] sm:$0xff]
    %v396 = vld [vmem:[%s3 + $0x8] sm:$0xff]
    %v397 = vld [vmem:[%s3 + $0x10] sm:$0xff]
    %v398 = vadd.f32 %v392, 1e-05
    %v399 = vadd.f32 %v393, 1e-05
    %v400 = vadd.f32 %v394, 1e-05
    %v401 = vrsqrt.pop %v398
    %v402 = vmul.f32 %v401, %v398
    %v403 = vmul.f32 %v402, %v401
    %v404 = vmul.f32 0.5, %v403
    %v405 = vsub.f32 1.5, %v404
    %v406 = vmul.f32 %v401, %v405
    %vm407 = vweird.f32 %v398
    %vm408 = vweird.f32 %v401
    %vm409 = vmor %vm407, %vm408
    %v410 = vsel %vm409, %v401, %v406
    %v411 = vrsqrt.pop %v399
    %v412 = vmul.f32 %v411, %v399
    %v413 = vmul.f32 %v412, %v411
    %v414 = vmul.f32 0.5, %v413
    %v415 = vsub.f32 1.5, %v414
    %v416 = vmul.f32 %v411, %v415
    %vm417 = vweird.f32 %v399
    %vm418 = vweird.f32 %v411
    %vm419 = vmor %vm417, %vm418
    %v420 = vsel %vm419, %v411, %v416
    %v421 = vrsqrt.pop %v400
    %v422 = vmul.f32 %v421, %v400
    %v423 = vmul.f32 %v422, %v421
    %v424 = vmul.f32 0.5, %v423
    %v425 = vsub.f32 1.5, %v424
    %v426 = vmul.f32 %v421, %v425
    %vm427 = vweird.f32 %v400
    %vm428 = vweird.f32 %v421
    %vm429 = vmor %vm427, %vm428
    %v430 = vsel %vm429, %v421, %v426
    %v431 = vmul.f32 %v395, %v410
    %v432 = vmul.f32 %v396, %v420
    %v433 = vmul.f32 %v397, %v430
    %v434 = vld [vmem:[%s4] sm:$0xff]
    %v435 = vld [vmem:[%s4 + $0x8] sm:$0xff]
    %v436 = vld [vmem:[%s4 + $0x10] sm:$0xff]
    %v437 = vmul.f32 %v335, %v431
    %v438 = vmul.f32 %v336, %v432
    %v439 = vmul.f32 %v337, %v433
    %v440 = vsub.f32 %v434, %v437
    %v441 = vsub.f32 %v435, %v438
    %v442 = vsub.f32 %v436, %v439
    %444 = vset.pattern.permute.xlu0 0
    %445 = vperm.xlu0 %444, %v431
    %v446 = vpop.permute.xlu0 %445
    %449 = vset.pattern.permute.xlu0 0
    %450 = vperm.xlu0 %449, %v432
    %v451 = vpop.permute.xlu0 %450
    %454 = vset.pattern.permute.xlu0 0
    %455 = vperm.xlu0 %454, %v433
    %v456 = vpop.permute.xlu0 %455
    %v458 = vmul.f32 %v136, %v446
    %v459 = vmul.f32 %v162, %v446
    %v460 = vmul.f32 %v188, %v446
    %v461 = vmul.f32 %v214, %v446
    %v462 = vmul.f32 %v240, %v446
    %v463 = vmul.f32 %v266, %v446
    %v464 = vmul.f32 %v292, %v446
    %v465 = vmul.f32 %v139, %v451
    %v466 = vmul.f32 %v165, %v451
    %v467 = vmul.f32 %v191, %v451
    %v468 = vmul.f32 %v217, %v451
    %v469 = vmul.f32 %v243, %v451
    %v470 = vmul.f32 %v269, %v451
    %v471 = vmul.f32 %v295, %v451
    %v472 = vmul.f32 %v142, %v456
    %v473 = vmul.f32 %v168, %v456
    %v474 = vmul.f32 %v194, %v456
    %v475 = vmul.f32 %v220, %v456
    %v476 = vmul.f32 %v246, %v456
    %v477 = vmul.f32 %v272, %v456
    %v478 = vmul.f32 %v298, %v456
    %480 = vset.pattern.permute.xlu0 0
    %481 = vperm.xlu0 %480, %v440
    %v482 = vpop.permute.xlu0 %481
    %485 = vset.pattern.permute.xlu0 0
    %486 = vperm.xlu0 %485, %v441
    %v487 = vpop.permute.xlu0 %486
    %490 = vset.pattern.permute.xlu0 0
    %491 = vperm.xlu0 %490, %v442
    %v492 = vpop.permute.xlu0 %491
    %v494 = vadd.f32 %v458, %v482
    %v495 = vadd.f32 %v459, %v482
    %v496 = vadd.f32 %v460, %v482
    %v497 = vadd.f32 %v461, %v482
    %v498 = vadd.f32 %v462, %v482
    %v499 = vadd.f32 %v463, %v482
    %v500 = vadd.f32 %v464, %v482
    %v501 = vadd.f32 %v465, %v487
    %v502 = vadd.f32 %v466, %v487
    %v503 = vadd.f32 %v467, %v487
    %v504 = vadd.f32 %v468, %v487
    %v505 = vadd.f32 %v469, %v487
    %v506 = vadd.f32 %v470, %v487
    %v507 = vadd.f32 %v471, %v487
    %v508 = vadd.f32 %v472, %v492
    %v509 = vadd.f32 %v473, %v492
    %v510 = vadd.f32 %v474, %v492
    %v511 = vadd.f32 %v475, %v492
    %v512 = vadd.f32 %v476, %v492
    %v513 = vadd.f32 %v477, %v492
    %v514 = vadd.f32 %v478, %v492
    %515 = vst [vmem:[#allocation5] sm:$0xff] %v494
    %516 = vst [vmem:[#allocation5 + $0x8] sm:$0xff] %v495
    %517 = vst [vmem:[#allocation5 + $0x10] sm:$0xff] %v496
    %518 = vst [vmem:[#allocation5 + $0x18] sm:$0xff] %v497
    %519 = vst [vmem:[#allocation5 + $0x20] sm:$0xff] %v498
    %520 = vst [vmem:[#allocation5 + $0x28] sm:$0xff] %v499
    %521 = vst.msk [vmem:[#allocation5 + $0x30] sm:$0xff] %vm305, %v500
    %522 = vst [vmem:[#allocation5 + $0x38] sm:$0xff] %v501
    %523 = vst [vmem:[#allocation5 + $0x40] sm:$0xff] %v502
    %524 = vst [vmem:[#allocation5 + $0x48] sm:$0xff] %v503
    %525 = vst [vmem:[#allocation5 + $0x50] sm:$0xff] %v504
    %526 = vst [vmem:[#allocation5 + $0x58] sm:$0xff] %v505
    %527 = vst [vmem:[#allocation5 + $0x60] sm:$0xff] %v506
    %528 = vst.msk [vmem:[#allocation5 + $0x68] sm:$0xff] %vm305, %v507
    %529 = vst [vmem:[#allocation5 + $0x70] sm:$0xff] %v508
    %530 = vst [vmem:[#allocation5 + $0x78] sm:$0xff] %v509
    %531 = vst [vmem:[#allocation5 + $0x80] sm:$0xff] %v510
    %532 = vst [vmem:[#allocation5 + $0x88] sm:$0xff] %v511
    %533 = vst [vmem:[#allocation5 + $0x90] sm:$0xff] %v512
    %534 = vst [vmem:[#allocation5 + $0x98] sm:$0xff] %v513
    %535 = vst.msk [vmem:[#allocation5 + $0xa0] sm:$0xff] %vm305, %v514
    // Predicated region
    $region26: #{tpu_custom_call.1} parent=1 // pred_check
      _
    $region27: #{tpu_custom_call.1} parent=1 // pred_check_branch
      %537 = sbr.rel (0) target = $region29
    $region28: #{tpu_custom_call.1} parent=1 // pred_region
      %539 = vsyncadd [#allocation4], 0
      %s540 = sshll.u32 [#allocation5], 4
      %s541 = int_to_ptr.vmem [resolvable:$true] %s540
      %s542 = sshll.u32 %s5, 4
      %s543 = int_to_ptr.hbm [resolvable:$true] %s542
      %548 = dma.vmem_to_hbm [thread:$0]  %s541, 2688, %s543, [#allocation4], 896, 896, 56
    $region29: #{tpu_custom_call.1} parent=1 // pred_fallthru
      _
    // Predicated region
    $region30: #{tpu_custom_call.1} parent=1 // pred_check
      _
    $region31: #{tpu_custom_call.1} parent=1 // pred_check_branch
      %550 = sbr.rel (0) target = $region33
    $region32: #{tpu_custom_call.1} parent=1 // pred_region
      %552 = dma.done [#allocation4], 2688
    $region33: #{tpu_custom_call.1} parent=1 // pred_fallthru
      _
    %553 = vsyncpa [#allocation3], 1
    %554 = vsyncpa [#allocation4], 1

</llo_original>
